<compile_context>
chip_gen: v6e
topology: v6e:2x2x1
jax: 0.10.0
libtpu: 0.0.40
codegen_flags: <defaults>
</compile_context>

<pallas_src>
import functools

import jax
import jax.numpy as jnp
from jax.experimental import pallas as pl
from jax.experimental.pallas import tpu as pltpu

LANE = 128            # pad out_features up to one full lane width
IN_FEATURES = 12
OUT_FEATURES = 2


def _linear_sigmoid_kernel(x_ref, w_ref, o_ref):
    # x_ref: (TB, 12) bf16   w_ref: (12, 128) bf16 (zero-padded lanes, VMEM-resident)
    # o_ref: (TB, 128) f32   -> lane-dense, unmasked stores
    acc = jnp.dot(x_ref[...], w_ref[...], preferred_element_type=jnp.float32)
    o_ref[...] = jax.nn.sigmoid(acc)          # f32 sigmoid on EUP, then dense f32 store


def prepare_weight(w):
    """One-time weight prep: PyTorch (out, in) layout -> transposed, lane-padded bf16 (in, 128)."""
    out_f, in_f = w.shape
    w_pad = jnp.zeros((in_f, LANE), dtype=jnp.bfloat16)
    return w_pad.at[:, :out_f].set(w.T.astype(jnp.bfloat16))


@functools.partial(jax.jit, static_argnames=("out_features", "block_b"))
def net_forward(x, w_padded, *, out_features=OUT_FEATURES, block_b=1024):
    """x: (B, 12) f32, w_padded from prepare_weight(). Returns sigmoid(x @ W.T): (B, out_features) f32."""
    B, in_f = x.shape

    # Batch tile: multiple of 8, capped at block_b; pad ragged batches and slice back.
    TB = min(block_b, pl.cdiv(B, 8) * 8)
    Bp = pl.cdiv(B, TB) * TB

    x_bf16 = x.astype(jnp.bfloat16)
    if Bp != B:
        x_bf16 = jnp.pad(x_bf16, ((0, Bp - B), (0, 0)))

    out_padded = pl.pallas_call(
        _linear_sigmoid_kernel,
        out_shape=jax.ShapeDtypeStruct((Bp, LANE), jnp.float32),
        grid=(Bp // TB,),
        in_specs=[
            pl.BlockSpec((TB, in_f), lambda i: (i, 0)),     # streamed batch tiles
            pl.BlockSpec((in_f, LANE), lambda i: (0, 0)),   # weight stays resident in VMEM
        ],
        out_specs=pl.BlockSpec((TB, LANE), lambda i: (i, 0)),
        compiler_params=pltpu.CompilerParams(
            dimension_semantics=("parallel",),              # megacore sharding on v7x
        ),
    )(x_bf16, w_padded)

    return out_padded[:B, :out_features]


if __name__ == "__main__":
    key = jax.random.PRNGKey(0)
    kx, kw = jax.random.split(key)

    B = 64
    x = jax.random.normal(kx, (B, IN_FEATURES), dtype=jnp.float32)
    w = jax.random.normal(kw, (OUT_FEATURES, IN_FEATURES), dtype=jnp.float32) * 0.1

    w_padded = prepare_weight(w)

    out = net_forward(x, w_padded)
    jax.block_until_ready(out)
    assert out.shape == (B, OUT_FEATURES)

    # Bit-consistent reference: same bf16 input quantization, f32 accumulation + f32 sigmoid.
    x_q = x.astype(jnp.bfloat16).astype(jnp.float32)
    w_q = w.astype(jnp.bfloat16).astype(jnp.float32)
    ref_bf16 = jax.nn.sigmoid(x_q @ w_q.T)
    assert jnp.allclose(out, ref_bf16, atol=1e-4, rtol=1e-4)

    # Semantics check vs the pure-f32 PyTorch forward (loose: bf16 input quantization only).
    ref_f32 = jax.nn.sigmoid(x @ w.T)
    assert jnp.allclose(out, ref_f32, atol=5e-3, rtol=5e-3)

    # Ragged-batch path (pad + slice-back) sanity check.
    B2 = 37
    x2 = jax.random.normal(jax.random.PRNGKey(1), (B2, IN_FEATURES), dtype=jnp.float32)
    out2 = net_forward(x2, w_padded)
    jax.block_until_ready(out2)
    assert out2.shape == (B2, OUT_FEATURES)
    ref2 = jax.nn.sigmoid(x2.astype(jnp.bfloat16).astype(jnp.float32) @ w_q.T)
    assert jnp.allclose(out2, ref2, atol=1e-4, rtol=1e-4)

    print("KERNEL_OK")
</pallas_src>

<mosaic_0001>
module attributes {stable_mosaic.version = 11 : i64} {
  func.func @_linear_sigmoid_kernel(%arg0: i32, %arg1: memref<64x12xbf16, #tpu.memory_space<vmem>>, %arg2: memref<12x128xbf16, #tpu.memory_space<vmem>>, %arg3: memref<64x128xf32, #tpu.memory_space<vmem>>) attributes {dimension_semantics = [#tpu.dimension_semantics<parallel>], iteration_bounds = array<i64: 1>, scalar_prefetch = 0 : i64, scratch_operands = 0 : i64, tpu.core_type = #tpu.core_type<tc>, window_params = [{transform_indices = @transform_0, window_bounds = array<i64: 64, 12>}, {pipeline_mode = #tpu.pipeline_mode<synchronous>, transform_indices = @transform_1, window_bounds = array<i64: 12, 128>}, {transform_indices = @transform_2, window_bounds = array<i64: 64, 128>}]} {
    %c0 = arith.constant 0 : index
    %c0_0 = arith.constant 0 : index
    %0 = vector.load %arg1[%c0, %c0_0] : memref<64x12xbf16, #tpu.memory_space<vmem>>, vector<64x12xbf16>
    %c0_1 = arith.constant 0 : index
    %c0_2 = arith.constant 0 : index
    %1 = vector.load %arg2[%c0_1, %c0_2] : memref<12x128xbf16, #tpu.memory_space<vmem>>, vector<12x128xbf16>
    %cst = arith.constant dense<0.000000e+00> : vector<64x128xf32>
    %2 = tpu.matmul %0, %1, %cst {dimension_numbers = #tpu.dot_dimension_numbers<[1], [0], [0], [1], [0, 0, 1, 1], [], []>} : vector<64x12xbf16>, vector<12x128xbf16>, vector<64x128xf32> -> vector<64x128xf32>
    %3 = arith.negf %2 : vector<64x128xf32>
    %4 = math.exp %3 : vector<64x128xf32>
    %cst_3 = arith.constant 1.000000e+00 : f32
    %5 = vector.broadcast %cst_3 : f32 to vector<64x128xf32>
    %6 = arith.addf %5, %4 : vector<64x128xf32>
    %7 = arith.divf %5, %6 : vector<64x128xf32>
    %c0_4 = arith.constant 0 : index
    %c0_5 = arith.constant 0 : index
    %8 = vector.load %arg3[%c0_4, %c0_5] : memref<64x128xf32, #tpu.memory_space<vmem>>, vector<64x128xf32>
    tpu.vector_store %arg3[%c0_4, %c0_5], %7 {strides = array<i32>} : memref<64x128xf32, #tpu.memory_space<vmem>>, vector<64x128xf32>,
    return
  }
  func.func @transform_0(%arg0: i32) -> (i32, i32) {
    %c0_i32 = arith.constant 0 : i32
    %c0_i32_0 = arith.constant 0 : i32
    return %arg0, %c0_i32 : i32, i32
  }
  func.func @transform_1(%arg0: i32) -> (i32, i32) {
    %c0_i32 = arith.constant 0 : i32
    %c0_i32_0 = arith.constant 0 : i32
    %c0_i32_1 = arith.constant 0 : i32
    return %c0_i32, %c0_i32_0 : i32, i32
  }
  func.func @transform_2(%arg0: i32) -> (i32, i32) {
    %c0_i32 = arith.constant 0 : i32
    %c0_i32_0 = arith.constant 0 : i32
    return %arg0, %c0_i32 : i32, i32
  }
}

</mosaic_0001>

<llo_original>
// kernel: net_forward.1
$region0: #{net_forward.1}
  #allocation0 [shape = 'u32[]', space=smem, size = 0x4, offset = 0x4, fixed_abs, tag = 'smem constant byte address 0x4 - core index']
  #allocation1 [shape = 'u32[144,128]{1,0:T(1,128)}', space=vmem, size = 0x12000, scoped, tag = 'internal scratch']
  %s0 = inlined_call_operand.vmem [shape: bf16[64,12], index: 0, kind: input, shape index: {}]
  %s1 = inlined_call_operand.vmem [shape: bf16[12,128], index: 1, kind: input, shape index: {}]
  %s2 = inlined_call_operand.vmem [shape: f32[64,128], index: 2, kind: output, shape index: {}]
  %s3 = sld [smem:[#allocation0]]
  $region18: #{net_forward.1} parent=0
    _
  %s5 = ssub.s32 1, %s3
  %s6 = scalar_select 0, %s5, %s3
  // Predicated region
  $region2: #{net_forward.1} parent=0 // pred_check
    _
  $region3: #{net_forward.1} parent=0 // pred_check_branch
    %8 = sbr.rel (0) target = $region5
  $region4: #{net_forward.1} parent=0 // pred_region
    _
  $region5: #{net_forward.1} parent=0 // pred_fallthru
    _
  // Predicated region
  $region6: #{net_forward.1} parent=0 // pred_check
    _
  $region7: #{net_forward.1} parent=0 // pred_check_branch
    %10 = sbr.rel (0) target = $region9
  $region8: #{net_forward.1} parent=0 // pred_region
    _
  $region9: #{net_forward.1} parent=0 // pred_fallthru
    _
  %v12 = vld [vmem:[%s0] sm:$0xf]
  %v13 = vld [vmem:[%s0 + $0x4] sm:$0xf]
  %v14 = vld [vmem:[%s0 + $0x8] sm:$0xf]
  %v15 = vld [vmem:[%s0 + $0xc] sm:$0xf]
  %v16 = vld [vmem:[%s0 + $0x10] sm:$0xf]
  %v17 = vld [vmem:[%s0 + $0x14] sm:$0xf]
  %v18 = vld [vmem:[%s0 + $0x18] sm:$0xf]
  %v19 = vld [vmem:[%s0 + $0x1c] sm:$0xf]
  %v20 = vld [vmem:[%s1] sm:$0xf]
  %v21 = vld [vmem:[%s1 + $0x4] sm:$0x3]
  %v30 = vunpack.c.l.b16 %v12
  %v31 = vunpack.c.l.b16 %v13
  %v32 = vunpack.c.l.b16 %v14
  %v33 = vunpack.c.l.b16 %v15
  %v34 = vunpack.c.l.b16 %v16
  %v35 = vunpack.c.l.b16 %v17
  %v36 = vunpack.c.l.b16 %v18
  %v37 = vunpack.c.l.b16 %v19
  %v38 = vpack.c.b16 %v31, %v30
  %v39 = vpack.c.b16 %v33, %v32
  %v40 = vpack.c.b16 %v35, %v34
  %v41 = vpack.c.b16 %v37, %v36
  %v44 = vunpack.c.l.b16 %v20
  %v45 = vunpack.c.l.b16 %v21
  %v46 = vpack.c.b16 %v45, %v44
  %vm47 = vcmask 97280
  %v49 = vsel %vm47, %v38, 0
  %v52 = vsel %vm47, %v39, 0
  %v55 = vsel %vm47, %v40, 0
  %v58 = vsel %vm47, %v41, 0
  %vm60 = vcmask 1045504
  %v62 = vsel %vm60, %v46, 0
  %64 = vmatprep.subr.bf16.mxu0 0
  %65 = vmatpush1.bf16.msra.mxu0 0
  %66 = vmatprep.subr.bf16.mxu0 0
  %67 = vmatpush1.bf16.msra.mxu0 0
  %68 = vmatprep.subr.bf16.mxu0 0
  %69 = vmatpush1.bf16.msra.mxu0 0
  %70 = vmatprep.subr.bf16.mxu0 0
  %71 = vmatpush1.bf16.msra.mxu0 0
  %72 = vmatprep.subr.bf16.mxu0 0
  %73 = vmatpush1.bf16.msra.mxu0 0
  %74 = vmatprep.subr.bf16.mxu0 0
  %75 = vmatpush1.bf16.msra.mxu0 0
  %76 = vmatprep.subr.bf16.mxu0 0
  %77 = vmatpush1.bf16.msra.mxu0 0
  %78 = vmatprep.subr.bf16.mxu0 0
  %79 = vmatpush1.bf16.msra.mxu0 %v62
  %80 = vmatprep.subr.bf16.mxu0 0
  %81 = vmatpush2.bf16.msra.mxu0 0
  %82 = vmatprep.subr.bf16.mxu0 0
  %83 = vmatpush2.bf16.msra.mxu0 0
  %84 = vmatprep.subr.bf16.mxu0 0
  %85 = vmatpush2.bf16.msra.mxu0 0
  %86 = vmatprep.subr.bf16.mxu0 0
  %87 = vmatpush2.bf16.msra.mxu0 0
  %88 = vmatprep.subr.bf16.mxu0 0
  %89 = vmatpush2.bf16.msra.mxu0 0
  %90 = vmatprep.subr.bf16.mxu0 0
  %91 = vmatpush2.bf16.msra.mxu0 0
  %92 = vmatprep.subr.bf16.mxu0 0
  %93 = vmatpush2.bf16.msra.mxu0 0
  %94 = vmatprep.subr.bf16.mxu0 0
  %95 = vmatpush2.bf16.msra.mxu0 0
  %96 = vmatprep.mubr.bf16.mxu0 0
  %97 = vmatmul.mubr.bf16.gmra.mxu0 %v49
  %v98 = vpop.f32.mrf.mxu0
  %v99 = vadd.f32 0.0, %v98
  %v100 = vpop.f32.mrf.mxu0
  %v101 = vpop.f32.mrf.mxu0
  %v102 = vadd.f32 0.0, %v101
  %v103 = vpop.f32.mrf.mxu0
  %104 = vmatprep.mubr.bf16.mxu0 0
  %105 = vmatmul.mubr.bf16.gmra.mxu0 %v52
  %v106 = vpop.f32.mrf.mxu0
  %v107 = vadd.f32 0.0, %v106
  %v108 = vpop.f32.mrf.mxu0
  %v109 = vpop.f32.mrf.mxu0
  %v110 = vadd.f32 0.0, %v109
  %v111 = vpop.f32.mrf.mxu0
  %112 = vmatprep.mubr.bf16.mxu0 0
  %113 = vmatmul.mubr.bf16.gmra.mxu0 %v55
  %v114 = vpop.f32.mrf.mxu0
  %v115 = vadd.f32 0.0, %v114
  %v116 = vpop.f32.mrf.mxu0
  %v117 = vpop.f32.mrf.mxu0
  %v118 = vadd.f32 0.0, %v117
  %v119 = vpop.f32.mrf.mxu0
  %120 = vmatprep.mubr.bf16.mxu0 0
  %121 = vmatmul.mubr.bf16.gmra.mxu0 %v58
  %v122 = vpop.f32.mrf.mxu0
  %v123 = vadd.f32 0.0, %v122
  %v124 = vpop.f32.mrf.mxu0
  %v125 = vpop.f32.mrf.mxu0
  %v126 = vadd.f32 0.0, %v125
  %v127 = vpop.f32.mrf.mxu0
  %128 = vdwg.mxu0
  %v129 = vxor.u32 %v99, 2147483648
  %v130 = vxor.u32 %v102, 2147483648
  %v131 = vxor.u32 %v107, 2147483648
  %v132 = vxor.u32 %v110, 2147483648
  %v133 = vxor.u32 %v115, 2147483648
  %v134 = vxor.u32 %v118, 2147483648
  %v135 = vxor.u32 %v123, 2147483648
  %v136 = vxor.u32 %v126, 2147483648
  %v137 = vmul.f32 %v129, 1.442695
  %v138 = vpow.pop %v137
  %v139 = vmul.f32 %v130, 1.442695
  %v140 = vpow.pop %v139
  %v141 = vmul.f32 %v131, 1.442695
  %v142 = vpow.pop %v141
  %v143 = vmul.f32 %v132, 1.442695
  %v144 = vpow.pop %v143
  %v145 = vmul.f32 %v133, 1.442695
  %v146 = vpow.pop %v145
  %v147 = vmul.f32 %v134, 1.442695
  %v148 = vpow.pop %v147
  %v149 = vmul.f32 %v135, 1.442695
  %v150 = vpow.pop %v149
  %v151 = vmul.f32 %v136, 1.442695
  %v152 = vpow.pop %v151
  %v153 = vadd.f32 %v138, 1.0
  %v154 = vadd.f32 %v140, 1.0
  %v155 = vadd.f32 %v142, 1.0
  %v156 = vadd.f32 %v144, 1.0
  %v157 = vadd.f32 %v146, 1.0
  %v158 = vadd.f32 %v148, 1.0
  %v159 = vadd.f32 %v150, 1.0
  %v160 = vadd.f32 %v152, 1.0
  %v161 = vrcp.pop %v153
  %v162 = vmul.f32 1.0, %v161
  %v163 = vrcp.pop %v154
  %v164 = vmul.f32 1.0, %v163
  %v165 = vrcp.pop %v155
  %v166 = vmul.f32 1.0, %v165
  %v167 = vrcp.pop %v156
  %v168 = vmul.f32 1.0, %v167
  %v169 = vrcp.pop %v157
  %v170 = vmul.f32 1.0, %v169
  %v171 = vrcp.pop %v158
  %v172 = vmul.f32 1.0, %v171
  %v173 = vrcp.pop %v159
  %v174 = vmul.f32 1.0, %v173
  %v175 = vrcp.pop %v160
  %v176 = vmul.f32 1.0, %v175
  %177 = vst [vmem:[%s2] sm:$0xff] %v162
  %178 = vst [vmem:[%s2 + $0x8] sm:$0xff] %v164
  %179 = vst [vmem:[%s2 + $0x10] sm:$0xff] %v166
  %180 = vst [vmem:[%s2 + $0x18] sm:$0xff] %v168
  %181 = vst [vmem:[%s2 + $0x20] sm:$0xff] %v170
  %182 = vst [vmem:[%s2 + $0x28] sm:$0xff] %v172
  %183 = vst [vmem:[%s2 + $0x30] sm:$0xff] %v174
  %184 = vst [vmem:[%s2 + $0x38] sm:$0xff] %v176
  // Predicated region
  $region10: #{net_forward.1} parent=0 // pred_check
    _
  $region11: #{net_forward.1} parent=0 // pred_check_branch
    %186 = sbr.rel (0) target = $region13
  $region12: #{net_forward.1} parent=0 // pred_region
    _
  $region13: #{net_forward.1} parent=0 // pred_fallthru
    _
  // Predicated region
  $region14: #{net_forward.1} parent=0 // pred_check
    _
  $region15: #{net_forward.1} parent=0 // pred_check_branch
    %188 = sbr.rel (0) target = $region17
  $region16: #{net_forward.1} parent=0 // pred_region
    _
  $region17: #{net_forward.1} parent=0 // pred_fallthru
    _

</llo_original>
